<compile_context>
chip_gen: v6e
topology: v6e:2x2x1
jax: 0.10.0
libtpu: 0.0.40
codegen_flags: <defaults>
</compile_context>

<pallas_src>
import functools
import math

import numpy as np
import jax
import jax.numpy as jnp
from jax.experimental import pallas as pl
from jax.experimental.pallas import tpu as pltpu


# ----------------------------------------------------------------------------
# Device-generation-aware VMEM budget & L-tile choice
# ----------------------------------------------------------------------------
def _vmem_budget_bytes():
    """Per-TensorCore VMEM budget (with headroom) by device generation."""
    try:
        kind = jax.devices()[0].device_kind.lower()
    except Exception:
        kind = ""
    if "v7" in kind:                       # v7x: 64 MiB per TensorCore
        return 56 * 1024 * 1024
    if "v5" in kind or "v6" in kind:       # v5e / v6e: 128 MiB
        return 100 * 1024 * 1024
    return 64 * 1024 * 1024                # unknown generation: conservative


def _choose_l_tile(l, c_in, c_out, budget_bytes, max_l_tile=None):
    """Largest 128-multiple L tile whose working set fits ~half the budget."""
    # Rough bytes per lane column in flight: double-buffered x & out f32
    # blocks plus compiler-managed h1 / h2 / res temporaries.
    bytes_per_lane = 4 * (2 * c_in + 2 * c_out) + 4 * (3 * c_out + c_in)
    tl = (budget_bytes // 2) // max(bytes_per_lane, 1)
    tl = max(128, (tl // 128) * 128)
    if max_l_tile is not None:
        tl = min(tl, max(128, (max_l_tile // 128) * 128))
    return l if l <= tl else tl


# ----------------------------------------------------------------------------
# Kernel: k == 1 (pad == 0) pointwise path, L-tiled
# ----------------------------------------------------------------------------
def _temporal_block_kernel_k1(*refs, downsample):
    if downsample:
        x_ref, w1_ref, b1_ref, w2_ref, b2_ref, wd_ref, bd_ref, o_ref = refs
    else:
        x_ref, w1_ref, b1_ref, w2_ref, b2_ref, o_ref = refs

    x = x_ref[0]                                     # (C_in, TL) f32
    xb = x.astype(jnp.bfloat16)                      # MXU-native operand
    h1 = jnp.maximum(
        jnp.dot(w1_ref[...], xb, preferred_element_type=jnp.float32)
        + b1_ref[...], 0.0)
    h2 = jnp.maximum(
        jnp.dot(w2_ref[...], h1.astype(jnp.bfloat16),
                preferred_element_type=jnp.float32) + b2_ref[...], 0.0)
    if downsample:                                   # 1x1 conv residual
        res = jnp.dot(wd_ref[...], xb,
                      preferred_element_type=jnp.float32) + bd_ref[...]
    else:                                            # nn.Identity (f32)
        res = x
    o_ref[0] = (h2 + res).astype(o_ref.dtype)


# ----------------------------------------------------------------------------
# Kernel: k > 1 gather-into-VMEM path (module forces L == 1 here, so tiny)
# ----------------------------------------------------------------------------
def _temporal_block_kernel_gather(*refs, k, dilation, downsample):
    if downsample:
        (x_ref, w1_ref, b1_ref, w2_ref, b2_ref, wd_ref, bd_ref,
         o_ref, xg1_ref, xg2_ref) = refs
    else:
        (x_ref, w1_ref, b1_ref, w2_ref, b2_ref,
         o_ref, xg1_ref, xg2_ref) = refs

    pad = (k - 1) * dilation

    def dilated_conv_relu(inp, xg_ref, w_ref, b_ref):
        # inp: (C, L_in) f32.  Tap t's window lands at lane offset
        # off = pad - t*dilation in row block t of the gathered scratch; the
        # remaining lanes of that row block are the zero-padding halo.  Only
        # the halo lanes are zeroed (data lanes are fully rewritten).
        c, l_in = inp.shape
        l_out = l_in + pad
        inp_s = inp.astype(xg_ref.dtype)             # cast at the store
        for t in range(k):                           # static unroll
            off = pad - t * dilation
            if off > 0:                               # left halo
                xg_ref[t * c:(t + 1) * c, 0:off] = jnp.zeros(
                    (c, off), xg_ref.dtype)
            if off + l_in < l_out:                    # right halo
                xg_ref[t * c:(t + 1) * c, off + l_in:l_out] = jnp.zeros(
                    (c, l_out - off - l_in), xg_ref.dtype)
            xg_ref[t * c:(t + 1) * c, off:off + l_in] = inp_s
        acc = jnp.dot(w_ref[...], xg_ref[...],
                      preferred_element_type=jnp.float32)   # (C_out, L_out)
        return jnp.maximum(acc + b_ref[...], 0.0)            # bias + ReLU

    x = x_ref[0]                                      # (C_in, L) f32, L tiny
    h1 = dilated_conv_relu(x, xg1_ref, w1_ref, b1_ref)        # (C_out, L+pad)
    h2 = dilated_conv_relu(h1, xg2_ref, w2_ref, b2_ref)       # (C_out, L+2p)

    if downsample:                                    # 1x1 conv residual
        res = jnp.dot(wd_ref[...], x.astype(jnp.bfloat16),
                      preferred_element_type=jnp.float32) + bd_ref[...]
    else:                                             # nn.Identity
        res = x
    # Same broadcasting as torch's `out + downsample(x)` (L == 1 here).
    o_ref[0] = (h2 + res).astype(o_ref.dtype)


# ----------------------------------------------------------------------------
# Wrapper
# ----------------------------------------------------------------------------
def temporal_block_forward(x_ncl, params, kernel_size, dilation, *,
                           max_l_tile=None):
    """Pallas TemporalBlock.forward.  x_ncl: (N, C_in, L) f32 (PyTorch NCL)."""
    n, c_in, l = x_ncl.shape
    c_out = params["w1"].shape[0]
    k = kernel_size
    pad = (k - 1) * dilation
    l1 = l + pad                           # length after conv1
    l2 = l1 + pad                          # length after conv2 (= output len)
    if not (l == l2 or l == 1 or l2 == 1):
        raise ValueError(
            f"residual lengths not broadcastable: {l2} vs {l} "
            "(the PyTorch module itself only supports kernel_size==1 or L==1)")

    downsample = "w_ds" in params
    if not downsample:
        assert c_in == c_out, "Identity residual requires in_ch == out_ch"

    budget = _vmem_budget_bytes()
    b1 = params["b1"].reshape(c_out, 1)
    b2 = params["b2"].reshape(c_out, 1)

    if k == 1:
        # ---- pointwise fast path, L-tiled, no gather scratch --------------
        w1 = params["w1"][:, :, 0].astype(jnp.bfloat16)
        w2 = params["w2"][:, :, 0].astype(jnp.bfloat16)
        tl = _choose_l_tile(l, c_in, c_out, budget, max_l_tile)

        inputs = [x_ncl, w1, b1, w2, b2]
        in_specs = [
            pl.BlockSpec((1, c_in, tl), lambda i, j: (i, 0, j)),
            pl.BlockSpec((c_out, c_in), lambda i, j: (0, 0)),
            pl.BlockSpec((c_out, 1), lambda i, j: (0, 0)),
            pl.BlockSpec((c_out, c_out), lambda i, j: (0, 0)),
            pl.BlockSpec((c_out, 1), lambda i, j: (0, 0)),
        ]
        if downsample:
            inputs += [params["w_ds"][:, :, 0].astype(jnp.bfloat16),
                       params["b_ds"].reshape(c_out, 1)]
            in_specs += [pl.BlockSpec((c_out, c_in), lambda i, j: (0, 0)),
                         pl.BlockSpec((c_out, 1), lambda i, j: (0, 0))]

        kernel = functools.partial(_temporal_block_kernel_k1,
                                   downsample=downsample)
        # NOTE: pl.Buffered(3) on the x/out specs is a possible follow-up if
        # per-tile compute is too short to hide the DMA; omitted for now.
        return pl.pallas_call(
            kernel,
            out_shape=jax.ShapeDtypeStruct((n, c_out, l), x_ncl.dtype),
            grid=(n, pl.cdiv(l, tl)),
            in_specs=in_specs,
            out_specs=pl.BlockSpec((1, c_out, tl), lambda i, j: (i, 0, j)),
            compiler_params=pltpu.CompilerParams(
                dimension_semantics=("parallel", "parallel"),
                vmem_limit_bytes=budget),
        )(*inputs)

    # ---- k > 1 gather path (L == 1 enforced by the broadcast check) -------
    # Tap-major flattening so row t*C + c of the gathered activations lines
    # up with column t*C + c of the weight: W2d[o, t*C + c] = W[o, c, t].
    w1 = jnp.transpose(params["w1"], (0, 2, 1)).reshape(
        c_out, k * c_in).astype(jnp.bfloat16)
    w2 = jnp.transpose(params["w2"], (0, 2, 1)).reshape(
        c_out, k * c_out).astype(jnp.bfloat16)
    # bf16 scratch when row blocks stay sublane-pair aligned; else f32.
    gather_dtype = (jnp.bfloat16 if (c_in % 2 == 0 and c_out % 2 == 0)
                    else jnp.float32)

    inputs = [x_ncl, w1, b1, w2, b2]
    in_specs = [
        pl.BlockSpec((1, c_in, l), lambda i: (i, 0, 0)),
        pl.BlockSpec((c_out, k * c_in), lambda i: (0, 0)),
        pl.BlockSpec((c_out, 1), lambda i: (0, 0)),
        pl.BlockSpec((c_out, k * c_out), lambda i: (0, 0)),
        pl.BlockSpec((c_out, 1), lambda i: (0, 0)),
    ]
    if downsample:
        inputs += [params["w_ds"][:, :, 0].astype(jnp.bfloat16),
                   params["b_ds"].reshape(c_out, 1)]
        in_specs += [pl.BlockSpec((c_out, c_in), lambda i: (0, 0)),
                     pl.BlockSpec((c_out, 1), lambda i: (0, 0))]

    kernel = functools.partial(_temporal_block_kernel_gather, k=k,
                               dilation=dilation, downsample=downsample)
    return pl.pallas_call(
        kernel,
        out_shape=jax.ShapeDtypeStruct((n, c_out, l2), x_ncl.dtype),
        grid=(n,),
        in_specs=in_specs,
        out_specs=pl.BlockSpec((1, c_out, l2), lambda i: (i, 0, 0)),
        scratch_shapes=[
            pltpu.VMEM((k * c_in, l1), gather_dtype),    # gathered conv1 in
            pltpu.VMEM((k * c_out, l2), gather_dtype),   # gathered conv2 in
        ],
        compiler_params=pltpu.CompilerParams(
            dimension_semantics=("parallel",),
            vmem_limit_bytes=budget),
    )(*inputs)


# ----------------------------------------------------------------------------
# Pure-JAX reference (correctness checking only)
# ----------------------------------------------------------------------------
def temporal_block_ref(x_ncl, params, kernel_size, dilation):
    pad = (kernel_size - 1) * dilation

    def conv1d(x, w, b, d, p):
        y = jax.lax.conv_general_dilated(
            x, w, window_strides=(1,), padding=[(p, p)], rhs_dilation=(d,),
            dimension_numbers=("NCH", "OIH", "NCH"),
            precision=jax.lax.Precision.HIGHEST)
        return y + b[None, :, None]

    h = jax.nn.relu(conv1d(x_ncl, params["w1"], params["b1"], dilation, pad))
    h = jax.nn.relu(conv1d(h, params["w2"], params["b2"], dilation, pad))
    res = (conv1d(x_ncl, params["w_ds"], params["b_ds"], 1, 0)
           if "w_ds" in params else x_ncl)
    return h + res


# ----------------------------------------------------------------------------
# Deterministic parameter init (matches nn.Conv1d parameter shapes)
# ----------------------------------------------------------------------------
def init_params(key, in_channels, out_channels, kernel_size):
    keys = jax.random.split(key, 6)

    def u(kk, shape, fan_in):
        bound = 1.0 / math.sqrt(fan_in)
        return jax.random.uniform(kk, shape, jnp.float32, -bound, bound)

    params = {
        "w1": u(keys[0], (out_channels, in_channels, kernel_size),
                in_channels * kernel_size),
        "b1": u(keys[1], (out_channels,), in_channels * kernel_size),
        "w2": u(keys[2], (out_channels, out_channels, kernel_size),
                out_channels * kernel_size),
        "b2": u(keys[3], (out_channels,), out_channels * kernel_size),
    }
    if in_channels != out_channels:
        params["w_ds"] = u(keys[4], (out_channels, in_channels, 1), in_channels)
        params["b_ds"] = u(keys[5], (out_channels,), in_channels)
    return params


# ----------------------------------------------------------------------------
if __name__ == "__main__":
    # Kernel stores weights in bf16 and runs MXU dots in the native bf16-pass
    # / f32-accumulate mode (same rounding as default-precision f32 dots),
    # while the reference uses Precision.HIGHEST, so allow ~3e-2 tolerance.
    # Structural/indexing bugs would show as O(0.1..1) errors.
    RTOL = ATOL = 3e-2

    root = jax.random.PRNGKey(0)
    kp_a, kx_a, kp_b, kx_b, kp_c, kx_c = jax.random.split(root, 6)

    # --- Check A: gather path, downsample (4->8), k=3, dilation=2, L=1 ------
    # (k > 1 residual add only broadcasts with L == 1; out length = 1+2*(k-1)d)
    p_a = init_params(kp_a, 4, 8, 3)
    x_a = jax.random.normal(kx_a, (2, 4, 1), jnp.float32)
    y_a = jax.block_until_ready(temporal_block_forward(x_a, p_a, 3, 2))
    ref_a = temporal_block_ref(x_a, p_a, 3, 2)
    assert y_a.shape == ref_a.shape == (2, 8, 9)
    np.testing.assert_allclose(np.asarray(y_a), np.asarray(ref_a),
                               rtol=RTOL, atol=ATOL)

    # --- Check B: pointwise path, Identity residual (8->8), k=1, L=16 -------
    p_b = init_params(kp_b, 8, 8, 1)
    x_b = jax.random.normal(kx_b, (2, 8, 16), jnp.float32)
    y_b = jax.block_until_ready(temporal_block_forward(x_b, p_b, 1, 1))
    ref_b = temporal_block_ref(x_b, p_b, 1, 1)
    assert y_b.shape == ref_b.shape == (2, 8, 16)
    np.testing.assert_allclose(np.asarray(y_b), np.asarray(ref_b),
                               rtol=RTOL, atol=ATOL)

    # --- Check C: pointwise path with L-tiling exercised (TL=128, L=256) ----
    p_c = init_params(kp_c, 4, 8, 1)
    x_c = jax.random.normal(kx_c, (2, 4, 256), jnp.float32)
    y_c = jax.block_until_ready(
        temporal_block_forward(x_c, p_c, 1, 1, max_l_tile=128))
    ref_c = temporal_block_ref(x_c, p_c, 1, 1)
    assert y_c.shape == ref_c.shape == (2, 8, 256)
    np.testing.assert_allclose(np.asarray(y_c), np.asarray(ref_c),
                               rtol=RTOL, atol=ATOL)

    print("KERNEL_OK")
</pallas_src>

<mosaic_0001>
module attributes {stable_mosaic.version = 11 : i64} {
  func.func @_temporal_block_kernel_gather(%arg0: i32, %arg1: memref<1x4x1xf32, #tpu.memory_space<vmem>>, %arg2: memref<8x12xbf16, #tpu.memory_space<vmem>>, %arg3: memref<8x1xf32, #tpu.memory_space<vmem>>, %arg4: memref<8x24xbf16, #tpu.memory_space<vmem>>, %arg5: memref<8x1xf32, #tpu.memory_space<vmem>>, %arg6: memref<8x4xbf16, #tpu.memory_space<vmem>>, %arg7: memref<8x1xf32, #tpu.memory_space<vmem>>, %arg8: memref<1x8x9xf32, #tpu.memory_space<vmem>>, %arg9: memref<12x5xbf16, #tpu.memory_space<vmem>>, %arg10: memref<24x9xbf16, #tpu.memory_space<vmem>>) attributes {dimension_semantics = [#tpu.dimension_semantics<parallel>], iteration_bounds = array<i64: 2>, scalar_prefetch = 0 : i64, scratch_operands = 2 : i64, tpu.core_type = #tpu.core_type<tc>, window_params = [{transform_indices = @transform_0, window_bounds = array<i64: 1, 4, 1>}, {pipeline_mode = #tpu.pipeline_mode<synchronous>, transform_indices = @transform_1, window_bounds = array<i64: 8, 12>}, {pipeline_mode = #tpu.pipeline_mode<synchronous>, transform_indices = @transform_2, window_bounds = array<i64: 8, 1>}, {pipeline_mode = #tpu.pipeline_mode<synchronous>, transform_indices = @transform_3, window_bounds = array<i64: 8, 24>}, {pipeline_mode = #tpu.pipeline_mode<synchronous>, transform_indices = @transform_4, window_bounds = array<i64: 8, 1>}, {pipeline_mode = #tpu.pipeline_mode<synchronous>, transform_indices = @transform_5, window_bounds = array<i64: 8, 4>}, {pipeline_mode = #tpu.pipeline_mode<synchronous>, transform_indices = @transform_6, window_bounds = array<i64: 8, 1>}, {transform_indices = @transform_7, window_bounds = array<i64: 1, 8, 9>}]} {
    %c0 = arith.constant 0 : index
    %c0_0 = arith.constant 0 : index
    %c0_1 = arith.constant 0 : index
    %0 = vector.load %arg1[%c0, %c0_0, %c0_1] : memref<1x4x1xf32, #tpu.memory_space<vmem>>, vector<1x4x1xf32>
    %1 = vector.shape_cast %0 : vector<1x4x1xf32> to vector<4x1xf32>
    %2 = arith.truncf %1 : vector<4x1xf32> to vector<4x1xbf16>
    %cst = arith.constant 0.000000e+00 : bf16
    %3 = vector.broadcast %cst : bf16 to vector<4x4xbf16>
    %c0_2 = arith.constant 0 : index
    %c0_3 = arith.constant 0 : index
    %4 = vector.load %arg9[%c0_2, %c0_3] : memref<12x5xbf16, #tpu.memory_space<vmem>>, vector<4x4xbf16>
    tpu.vector_store %arg9[%c0_2, %c0_3], %3 {strides = array<i32>} : memref<12x5xbf16, #tpu.memory_space<vmem>>, vector<4x4xbf16>,
    %c0_4 = arith.constant 0 : index
    %c4 = arith.constant 4 : index
    %5 = vector.load %arg9[%c0_4, %c4] : memref<12x5xbf16, #tpu.memory_space<vmem>>, vector<4x1xbf16>
    tpu.vector_store %arg9[%c0_4, %c4], %2 {strides = array<i32>} : memref<12x5xbf16, #tpu.memory_space<vmem>>, vector<4x1xbf16>,
    %cst_5 = arith.constant 0.000000e+00 : bf16
    %6 = vector.broadcast %cst_5 : bf16 to vector<4x2xbf16>
    %c4_6 = arith.constant 4 : index
    %c0_7 = arith.constant 0 : index
    %7 = vector.load %arg9[%c4_6, %c0_7] : memref<12x5xbf16, #tpu.memory_space<vmem>>, vector<4x2xbf16>
    tpu.vector_store %arg9[%c4_6, %c0_7], %6 {strides = array<i32>} : memref<12x5xbf16, #tpu.memory_space<vmem>>, vector<4x2xbf16>,
    %cst_8 = arith.constant 0.000000e+00 : bf16
    %8 = vector.broadcast %cst_8 : bf16 to vector<4x2xbf16>
    %c4_9 = arith.constant 4 : index
    %c3 = arith.constant 3 : index
    %9 = vector.load %arg9[%c4_9, %c3] : memref<12x5xbf16, #tpu.memory_space<vmem>>, vector<4x2xbf16>
    tpu.vector_store %arg9[%c4_9, %c3], %8 {strides = array<i32>} : memref<12x5xbf16, #tpu.memory_space<vmem>>, vector<4x2xbf16>,
    %c4_10 = arith.constant 4 : index
    %c2 = arith.constant 2 : index
    %10 = vector.load %arg9[%c4_10, %c2] : memref<12x5xbf16, #tpu.memory_space<vmem>>, vector<4x1xbf16>
    tpu.vector_store %arg9[%c4_10, %c2], %2 {strides = array<i32>} : memref<12x5xbf16, #tpu.memory_space<vmem>>, vector<4x1xbf16>,
    %cst_11 = arith.constant 0.000000e+00 : bf16
    %11 = vector.broadcast %cst_11 : bf16 to vector<4x4xbf16>
    %c8 = arith.constant 8 : index
    %c1 = arith.constant 1 : index
    %12 = vector.load %arg9[%c8, %c1] : memref<12x5xbf16, #tpu.memory_space<vmem>>, vector<4x4xbf16>
    tpu.vector_store %arg9[%c8, %c1], %11 {strides = array<i32>} : memref<12x5xbf16, #tpu.memory_space<vmem>>, vector<4x4xbf16>,
    %c8_12 = arith.constant 8 : index
    %c0_13 = arith.constant 0 : index
    %13 = vector.load %arg9[%c8_12, %c0_13] : memref<12x5xbf16, #tpu.memory_space<vmem>>, vector<4x1xbf16>
    tpu.vector_store %arg9[%c8_12, %c0_13], %2 {strides = array<i32>} : memref<12x5xbf16, #tpu.memory_space<vmem>>, vector<4x1xbf16>,
    %c0_14 = arith.constant 0 : index
    %c0_15 = arith.constant 0 : index
    %14 = vector.load %arg2[%c0_14, %c0_15] : memref<8x12xbf16, #tpu.memory_space<vmem>>, vector<8x12xbf16>
    %c0_16 = arith.constant 0 : index
    %c0_17 = arith.constant 0 : index
    %15 = vector.load %arg9[%c0_16, %c0_17] : memref<12x5xbf16, #tpu.memory_space<vmem>>, vector<12x5xbf16>
    %cst_18 = arith.constant dense<0.000000e+00> : vector<8x5xf32>
    %16 = tpu.matmul %14, %15, %cst_18 {dimension_numbers = #tpu.dot_dimension_numbers<[1], [0], [0], [1], [0, 0, 1, 1], [], []>} : vector<8x12xbf16>, vector<12x5xbf16>, vector<8x5xf32> -> vector<8x5xf32>
    %c0_19 = arith.constant 0 : index
    %c0_20 = arith.constant 0 : index
    %17 = vector.load %arg3[%c0_19, %c0_20] : memref<8x1xf32, #tpu.memory_space<vmem>>, vector<8x1xf32>
    %18 = vector.broadcast %17 : vector<8x1xf32> to vector<8x5xf32>
    %19 = arith.addf %16, %18 : vector<8x5xf32>
    %cst_21 = arith.constant 0.000000e+00 : f32
    %20 = vector.broadcast %cst_21 : f32 to vector<8x5xf32>
    %21 = arith.maximumf %19, %20 : vector<8x5xf32>
    %22 = arith.truncf %21 : vector<8x5xf32> to vector<8x5xbf16>
    %cst_22 = arith.constant 0.000000e+00 : bf16
    %23 = vector.broadcast %cst_22 : bf16 to vector<8x4xbf16>
    %c0_23 = arith.constant 0 : index
    %c0_24 = arith.constant 0 : index
    %24 = vector.load %arg10[%c0_23, %c0_24] : memref<24x9xbf16, #tpu.memory_space<vmem>>, vector<8x4xbf16>
    tpu.vector_store %arg10[%c0_23, %c0_24], %23 {strides = array<i32>} : memref<24x9xbf16, #tpu.memory_space<vmem>>, vector<8x4xbf16>,
    %c0_25 = arith.constant 0 : index
    %c4_26 = arith.constant 4 : index
    %25 = vector.load %arg10[%c0_25, %c4_26] : memref<24x9xbf16, #tpu.memory_space<vmem>>, vector<8x5xbf16>
    tpu.vector_store %arg10[%c0_25, %c4_26], %22 {strides = array<i32>} : memref<24x9xbf16, #tpu.memory_space<vmem>>, vector<8x5xbf16>,
    %cst_27 = arith.constant 0.000000e+00 : bf16
    %26 = vector.broadcast %cst_27 : bf16 to vector<8x2xbf16>
    %c8_28 = arith.constant 8 : index
    %c0_29 = arith.constant 0 : index
    %27 = vector.load %arg10[%c8_28, %c0_29] : memref<24x9xbf16, #tpu.memory_space<vmem>>, vector<8x2xbf16>
    tpu.vector_store %arg10[%c8_28, %c0_29], %26 {strides = array<i32>} : memref<24x9xbf16, #tpu.memory_space<vmem>>, vector<8x2xbf16>,
    %cst_30 = arith.constant 0.000000e+00 : bf16
    %28 = vector.broadcast %cst_30 : bf16 to vector<8x2xbf16>
    %c8_31 = arith.constant 8 : index
    %c7 = arith.constant 7 : index
    %29 = vector.load %arg10[%c8_31, %c7] : memref<24x9xbf16, #tpu.memory_space<vmem>>, vector<8x2xbf16>
    tpu.vector_store %arg10[%c8_31, %c7], %28 {strides = array<i32>} : memref<24x9xbf16, #tpu.memory_space<vmem>>, vector<8x2xbf16>,
    %c8_32 = arith.constant 8 : index
    %c2_33 = arith.constant 2 : index
    %30 = vector.load %arg10[%c8_32, %c2_33] : memref<24x9xbf16, #tpu.memory_space<vmem>>, vector<8x5xbf16>
    tpu.vector_store %arg10[%c8_32, %c2_33], %22 {strides = array<i32>} : memref<24x9xbf16, #tpu.memory_space<vmem>>, vector<8x5xbf16>,
    %cst_34 = arith.constant 0.000000e+00 : bf16
    %31 = vector.broadcast %cst_34 : bf16 to vector<8x4xbf16>
    %c16 = arith.constant 16 : index
    %c5 = arith.constant 5 : index
    %32 = vector.load %arg10[%c16, %c5] : memref<24x9xbf16, #tpu.memory_space<vmem>>, vector<8x4xbf16>
    tpu.vector_store %arg10[%c16, %c5], %31 {strides = array<i32>} : memref<24x9xbf16, #tpu.memory_space<vmem>>, vector<8x4xbf16>,
    %c16_35 = arith.constant 16 : index
    %c0_36 = arith.constant 0 : index
    %33 = vector.load %arg10[%c16_35, %c0_36] : memref<24x9xbf16, #tpu.memory_space<vmem>>, vector<8x5xbf16>
    tpu.vector_store %arg10[%c16_35, %c0_36], %22 {strides = array<i32>} : memref<24x9xbf16, #tpu.memory_space<vmem>>, vector<8x5xbf16>,
    %c0_37 = arith.constant 0 : index
    %c0_38 = arith.constant 0 : index
    %34 = vector.load %arg4[%c0_37, %c0_38] : memref<8x24xbf16, #tpu.memory_space<vmem>>, vector<8x24xbf16>
    %c0_39 = arith.constant 0 : index
    %c0_40 = arith.constant 0 : index
    %35 = vector.load %arg10[%c0_39, %c0_40] : memref<24x9xbf16, #tpu.memory_space<vmem>>, vector<24x9xbf16>
    %cst_41 = arith.constant dense<0.000000e+00> : vector<8x9xf32>
    %36 = tpu.matmul %34, %35, %cst_41 {dimension_numbers = #tpu.dot_dimension_numbers<[1], [0], [0], [1], [0, 0, 1, 1], [], []>} : vector<8x24xbf16>, vector<24x9xbf16>, vector<8x9xf32> -> vector<8x9xf32>
    %c0_42 = arith.constant 0 : index
    %c0_43 = arith.constant 0 : index
    %37 = vector.load %arg5[%c0_42, %c0_43] : memref<8x1xf32, #tpu.memory_space<vmem>>, vector<8x1xf32>
    %38 = vector.broadcast %37 : vector<8x1xf32> to vector<8x9xf32>
    %39 = arith.addf %36, %38 : vector<8x9xf32>
    %cst_44 = arith.constant 0.000000e+00 : f32
    %40 = vector.broadcast %cst_44 : f32 to vector<8x9xf32>
    %41 = arith.maximumf %39, %40 : vector<8x9xf32>
    %c0_45 = arith.constant 0 : index
    %c0_46 = arith.constant 0 : index
    %42 = vector.load %arg6[%c0_45, %c0_46] : memref<8x4xbf16, #tpu.memory_space<vmem>>, vector<8x4xbf16>
    %43 = arith.truncf %1 : vector<4x1xf32> to vector<4x1xbf16>
    %cst_47 = arith.constant dense<0.000000e+00> : vector<8x1xf32>
    %44 = tpu.matmul %42, %43, %cst_47 {dimension_numbers = #tpu.dot_dimension_numbers<[1], [0], [0], [1], [0, 0, 1, 1], [], []>} : vector<8x4xbf16>, vector<4x1xbf16>, vector<8x1xf32> -> vector<8x1xf32>
    %c0_48 = arith.constant 0 : index
    %c0_49 = arith.constant 0 : index
    %45 = vector.load %arg7[%c0_48, %c0_49] : memref<8x1xf32, #tpu.memory_space<vmem>>, vector<8x1xf32>
    %46 = arith.addf %44, %45 : vector<8x1xf32>
    %47 = vector.broadcast %46 : vector<8x1xf32> to vector<8x9xf32>
    %48 = arith.addf %41, %47 : vector<8x9xf32>
    %c0_50 = arith.constant 0 : index
    %c0_51 = arith.constant 0 : index
    %c0_52 = arith.constant 0 : index
    %49 = vector.load %arg8[%c0_50, %c0_51, %c0_52] : memref<1x8x9xf32, #tpu.memory_space<vmem>>, vector<1x8x9xf32>
    %50 = vector.shape_cast %49 : vector<1x8x9xf32> to vector<8x9xf32>
    %51 = vector.shape_cast %48 : vector<8x9xf32> to vector<1x8x9xf32>
    tpu.vector_store %arg8[%c0_50, %c0_51, %c0_52], %51 {strides = array<i32>} : memref<1x8x9xf32, #tpu.memory_space<vmem>>, vector<1x8x9xf32>,
    return
  }
  func.func @transform_0(%arg0: i32) -> (i32, i32, i32) {
    %c0_i32 = arith.constant 0 : i32
    %c0_i32_0 = arith.constant 0 : i32
    %c0_i32_1 = arith.constant 0 : i32
    return %arg0, %c0_i32, %c0_i32_0 : i32, i32, i32
  }
  func.func @transform_1(%arg0: i32) -> (i32, i32) {
    %c0_i32 = arith.constant 0 : i32
    %c0_i32_0 = arith.constant 0 : i32
    %c0_i32_1 = arith.constant 0 : i32
    return %c0_i32, %c0_i32_0 : i32, i32
  }
  func.func @transform_2(%arg0: i32) -> (i32, i32) {
    %c0_i32 = arith.constant 0 : i32
    %c0_i32_0 = arith.constant 0 : i32
    %c0_i32_1 = arith.constant 0 : i32
    return %c0_i32, %c0_i32_0 : i32, i32
  }
  func.func @transform_3(%arg0: i32) -> (i32, i32) {
    %c0_i32 = arith.constant 0 : i32
    %c0_i32_0 = arith.constant 0 : i32
    %c0_i32_1 = arith.constant 0 : i32
    return %c0_i32, %c0_i32_0 : i32, i32
  }
  func.func @transform_4(%arg0: i32) -> (i32, i32) {
    %c0_i32 = arith.constant 0 : i32
    %c0_i32_0 = arith.constant 0 : i32
    %c0_i32_1 = arith.constant 0 : i32
    return %c0_i32, %c0_i32_0 : i32, i32
  }
  func.func @transform_5(%arg0: i32) -> (i32, i32) {
    %c0_i32 = arith.constant 0 : i32
    %c0_i32_0 = arith.constant 0 : i32
    %c0_i32_1 = arith.constant 0 : i32
    return %c0_i32, %c0_i32_0 : i32, i32
  }
  func.func @transform_6(%arg0: i32) -> (i32, i32) {
    %c0_i32 = arith.constant 0 : i32
    %c0_i32_0 = arith.constant 0 : i32
    %c0_i32_1 = arith.constant 0 : i32
    return %c0_i32, %c0_i32_0 : i32, i32
  }
  func.func @transform_7(%arg0: i32) -> (i32, i32, i32) {
    %c0_i32 = arith.constant 0 : i32
    %c0_i32_0 = arith.constant 0 : i32
    %c0_i32_1 = arith.constant 0 : i32
    return %arg0, %c0_i32, %c0_i32_0 : i32, i32, i32
  }
}

</mosaic_0001>

<llo_original>
// kernel: tpu_custom_call.1
$region0: #{tpu_custom_call.1}
  #allocation0 [shape = 'u32[]', space=smem, size = 0x4, offset = 0x4, fixed_abs, tag = 'smem constant byte address 0x4 - core index']
  #allocation1 [shape = 'u32[144,128]{1,0:T(1,128)}', space=vmem, size = 0x12000, scoped, tag = 'internal scratch']
  #allocation2 [shape = 'bf16[12,5]{1,0:T(8,128)(2,1)}', space=vmem, size = 0x1000, scoped, tag = 'scratch operand']
  #allocation3 [shape = 'bf16[24,9]{1,0:T(8,128)(2,1)}', space=vmem, size = 0x1800, scoped, tag = 'scratch operand']
  %s0 = inlined_call_operand.vmem [shape: f32[2,4,1], index: 0, kind: input, shape index: {}]
  %s1 = inlined_call_operand.vmem [shape: bf16[8,12], index: 1, kind: input, shape index: {}]
  %s2 = inlined_call_operand.vmem [shape: f32[8,1], index: 2, kind: input, shape index: {}]
  %s3 = inlined_call_operand.vmem [shape: bf16[8,24], index: 3, kind: input, shape index: {}]
  %s4 = inlined_call_operand.vmem [shape: f32[8,1], index: 4, kind: input, shape index: {}]
  %s5 = inlined_call_operand.vmem [shape: bf16[8,4], index: 5, kind: input, shape index: {}]
  %s6 = inlined_call_operand.vmem [shape: f32[8,1], index: 6, kind: input, shape index: {}]
  %s7 = inlined_call_operand.hbm [shape: f32[2,8,9], index: 7, kind: output, shape index: {}]
  %s8 = sld [smem:[#allocation0]]
  $region61: #{tpu_custom_call.1} parent=0
    _
  %s10 = ssub.s32 1, %s8
  %s11 = scalar_select 0, %s10, %s8
  $region1: #{tpu_custom_call.1} parent=0
    #allocation4 [shape = 'u8[8192]{0}', space=vmem, size = 0x2000, scoped, tag = 'output window, operand 0']
    #allocation5 [shape = 's32[2]{0}', space=sflag, size = 0x8, scoped, tag = 'scoped memory for tpu_custom_call.1']
    %12 = vsyncpa [#allocation5], 0
    %s13 = scalar_lea.sflag [#allocation5], 1
    %14 = vsyncpa %s13, 0
    loop: start=0, step=1, limit=4
    $region2: #{tpu_custom_call.1} parent=1 // loop_pre_header
      _
    $region3: #{tpu_custom_call.1} parent=1 // loop_header
      %s16 = sphi 0, %s20
      %p17 = scmp.ge.s32.totalorder %s16, 4
      %s26 = sphi 0, %s28
      %s29 = sphi 0, %s26
      %s30 = sphi 0, %s29
      %s46 = sphi 0, %s30
      %s50 = sphi 0, %s50
      %s52 = sphi 0, %s50
      %s53 = sphi 0, %s52
      %s67 = sphi 0, %s53
      %s71 = sphi 0, %s71
      %s73 = sphi 0, %s71
      %s74 = sphi 0, %s73
      %s88 = sphi 0, %s74
      %s92 = sphi 0, %s92
      %s94 = sphi 0, %s92
      %s95 = sphi 0, %s94
      %s109 = sphi 0, %s95
      %s113 = sphi 0, %s113
      %s115 = sphi 0, %s113
      %s116 = sphi 0, %s115
      %s130 = sphi 0, %s116
      %s134 = sphi 0, %s134
      %s136 = sphi 0, %s134
      %s137 = sphi 0, %s136
      %s151 = sphi 0, %s137
      %s155 = sphi 0, %s155
      %s157 = sphi 0, %s155
      %s158 = sphi 0, %s157
      %s172 = sphi 0, %s158
      %s178 = sphi 0, %s180
      %s181 = sphi 0, %s178
      %s182 = sphi 0, %s181
      %s198 = sphi 0, %s182
    $region4: #{tpu_custom_call.1} parent=1 // loop_header_branch
      %19 = sbr.rel (%p17) target = $region8
    $region5: #{tpu_custom_call.1} parent=1 // loop_body
      %s21 = ssub.s32 %s16, 1
      %s22 = ssub.s32 %s16, 2
      %s23 = sadd.s32 %s16, 1
      %s24 = ssub.s32 %s16, %s23
      %p25 = scmp.eq.s32.totalorder %s24, 0
      %s27 = sadd.s32 %s26, 1
      %s28 = scalar_select %p25, %s26, %s27
      %p31 = pneg %p25
      %p32 = scmp.eq.s32.totalorder %s16, 1
      %p33 = por %p31, %p32
      %p34 = scmp.ne.s32.totalorder %s26, %s29
      %p35 = scmp.eq.s32.totalorder %s16, 0
      %p36 = por %p34, %p35
      %p37 = scmp.ne.s32.totalorder %s26, %s29
      %p38 = scmp.eq.s32.totalorder %s21, 1
      %p39 = por %p37, %p38
      %p40 = scmp.ne.s32.totalorder %s29, %s30
      %p41 = scmp.eq.s32.totalorder %s21, 0
      %p42 = por %p40, %p41
      %p43 = scmp.ne.s32.totalorder %s29, %s30
      %p44 = scmp.eq.s32.totalorder %s22, 1
      %p45 = por %p43, %p44
      %p47 = scmp.ne.s32.totalorder %s30, %s46
      %p48 = scmp.eq.s32.totalorder %s22, 0
      %p49 = por %p47, %p48
      %s51 = sadd.s32 %s50, 1
      %p54 = scmp.eq.s32.totalorder %s16, 1
      %p55 = scmp.ne.s32.totalorder %s50, %s52
      %p56 = scmp.eq.s32.totalorder %s16, 0
      %p57 = por %p55, %p56
      %p58 = scmp.ne.s32.totalorder %s50, %s52
      %p59 = scmp.eq.s32.totalorder %s21, 1
      %p60 = por %p58, %p59
      %p61 = scmp.ne.s32.totalorder %s52, %s53
      %p62 = scmp.eq.s32.totalorder %s21, 0
      %p63 = por %p61, %p62
      %p64 = scmp.ne.s32.totalorder %s52, %s53
      %p65 = scmp.eq.s32.totalorder %s22, 1
      %p66 = por %p64, %p65
      %p68 = scmp.ne.s32.totalorder %s53, %s67
      %p69 = scmp.eq.s32.totalorder %s22, 0
      %p70 = por %p68, %p69
      %s72 = sadd.s32 %s71, 1
      %p75 = scmp.eq.s32.totalorder %s16, 1
      %p76 = scmp.ne.s32.totalorder %s71, %s73
      %p77 = scmp.eq.s32.totalorder %s16, 0
      %p78 = por %p76, %p77
      %p79 = scmp.ne.s32.totalorder %s71, %s73
      %p80 = scmp.eq.s32.totalorder %s21, 1
      %p81 = por %p79, %p80
      %p82 = scmp.ne.s32.totalorder %s73, %s74
      %p83 = scmp.eq.s32.totalorder %s21, 0
      %p84 = por %p82, %p83
      %p85 = scmp.ne.s32.totalorder %s73, %s74
      %p86 = scmp.eq.s32.totalorder %s22, 1
      %p87 = por %p85, %p86
      %p89 = scmp.ne.s32.totalorder %s74, %s88
      %p90 = scmp.eq.s32.totalorder %s22, 0
      %p91 = por %p89, %p90
      %s93 = sadd.s32 %s92, 1
      %p96 = scmp.eq.s32.totalorder %s16, 1
      %p97 = scmp.ne.s32.totalorder %s92, %s94
      %p98 = scmp.eq.s32.totalorder %s16, 0
      %p99 = por %p97, %p98
      %p100 = scmp.ne.s32.totalorder %s92, %s94
      %p101 = scmp.eq.s32.totalorder %s21, 1
      %p102 = por %p100, %p101
      %p103 = scmp.ne.s32.totalorder %s94, %s95
      %p104 = scmp.eq.s32.totalorder %s21, 0
      %p105 = por %p103, %p104
      %p106 = scmp.ne.s32.totalorder %s94, %s95
      %p107 = scmp.eq.s32.totalorder %s22, 1
      %p108 = por %p106, %p107
      %p110 = scmp.ne.s32.totalorder %s95, %s109
      %p111 = scmp.eq.s32.totalorder %s22, 0
      %p112 = por %p110, %p111
      %s114 = sadd.s32 %s113, 1
      %p117 = scmp.eq.s32.totalorder %s16, 1
      %p118 = scmp.ne.s32.totalorder %s113, %s115
      %p119 = scmp.eq.s32.totalorder %s16, 0
      %p120 = por %p118, %p119
      %p121 = scmp.ne.s32.totalorder %s113, %s115
      %p122 = scmp.eq.s32.totalorder %s21, 1
      %p123 = por %p121, %p122
      %p124 = scmp.ne.s32.totalorder %s115, %s116
      %p125 = scmp.eq.s32.totalorder %s21, 0
      %p126 = por %p124, %p125
      %p127 = scmp.ne.s32.totalorder %s115, %s116
      %p128 = scmp.eq.s32.totalorder %s22, 1
      %p129 = por %p127, %p128
      %p131 = scmp.ne.s32.totalorder %s116, %s130
      %p132 = scmp.eq.s32.totalorder %s22, 0
      %p133 = por %p131, %p132
      %s135 = sadd.s32 %s134, 1
      %p138 = scmp.eq.s32.totalorder %s16, 1
      %p139 = scmp.ne.s32.totalorder %s134, %s136
      %p140 = scmp.eq.s32.totalorder %s16, 0
      %p141 = por %p139, %p140
      %p142 = scmp.ne.s32.totalorder %s134, %s136
      %p143 = scmp.eq.s32.totalorder %s21, 1
      %p144 = por %p142, %p143
      %p145 = scmp.ne.s32.totalorder %s136, %s137
      %p146 = scmp.eq.s32.totalorder %s21, 0
      %p147 = por %p145, %p146
      %p148 = scmp.ne.s32.totalorder %s136, %s137
      %p149 = scmp.eq.s32.totalorder %s22, 1
      %p150 = por %p148, %p149
      %p152 = scmp.ne.s32.totalorder %s137, %s151
      %p153 = scmp.eq.s32.totalorder %s22, 0
      %p154 = por %p152, %p153
      %s156 = sadd.s32 %s155, 1
      %p159 = scmp.eq.s32.totalorder %s16, 1
      %p160 = scmp.ne.s32.totalorder %s155, %s157
      %p161 = scmp.eq.s32.totalorder %s16, 0
      %p162 = por %p160, %p161
      %p163 = scmp.ne.s32.totalorder %s155, %s157
      %p164 = scmp.eq.s32.totalorder %s21, 1
      %p165 = por %p163, %p164
      %p166 = scmp.ne.s32.totalorder %s157, %s158
      %p167 = scmp.eq.s32.totalorder %s21, 0
      %p168 = por %p166, %p167
      %p169 = scmp.ne.s32.totalorder %s157, %s158
      %p170 = scmp.eq.s32.totalorder %s22, 1
      %p171 = por %p169, %p170
      %p173 = scmp.ne.s32.totalorder %s158, %s172
      %p174 = scmp.eq.s32.totalorder %s22, 0
      %p175 = por %p173, %p174
      %s176 = ssub.s32 %s16, %s23
      %p177 = scmp.eq.s32.totalorder %s176, 0
      %s179 = sadd.s32 %s178, 1
      %s180 = scalar_select %p177, %s178, %s179
      %p183 = pneg %p177
      %p184 = scmp.eq.s32.totalorder %s16, 1
      %p185 = por %p183, %p184
      %p186 = scmp.ne.s32.totalorder %s178, %s181
      %p187 = scmp.eq.s32.totalorder %s16, 0
      %p188 = por %p186, %p187
      %p189 = scmp.ne.s32.totalorder %s178, %s181
      %p190 = scmp.eq.s32.totalorder %s21, 1
      %p191 = por %p189, %p190
      %p192 = scmp.ne.s32.totalorder %s181, %s182
      %p193 = scmp.eq.s32.totalorder %s21, 0
      %p194 = por %p192, %p193
      %p195 = scmp.ne.s32.totalorder %s181, %s182
      %p196 = scmp.eq.s32.totalorder %s22, 1
      %p197 = por %p195, %p196
      %p199 = scmp.ne.s32.totalorder %s182, %s198
      %p200 = scmp.eq.s32.totalorder %s22, 0
      %p201 = por %p199, %p200
      %p202 = scmp.le.s32.totalorder 1, %s16
      %p203 = scmp.lt.s32.totalorder %s16, 3
      %p204 = pnand %p202, %p203
      %p205 = pneg %p204
      // Predicated region
      $region9: #{tpu_custom_call.1} parent=5 // pred_check
        _
      $region10: #{tpu_custom_call.1} parent=5 // pred_check_branch
        %207 = sbr.rel (%p204) target = $region12
      $region11: #{tpu_custom_call.1} parent=5 // pred_region
        %s208 = ssub.s32 %s16, 1
        // Predicated region
        $region13: #{tpu_custom_call.1} parent=11 // pred_check
          %p209 = pneg %p63
        $region14: #{tpu_custom_call.1} parent=11 // pred_check_branch
          %211 = sbr.rel (%p209) target = $region16
        $region15: #{tpu_custom_call.1} parent=11 // pred_region
          _
        $region16: #{tpu_custom_call.1} parent=11 // pred_fallthru
          _
        // Predicated region
        $region17: #{tpu_custom_call.1} parent=11 // pred_check
          %p212 = pneg %p84
        $region18: #{tpu_custom_call.1} parent=11 // pred_check_branch
          %214 = sbr.rel (%p212) target = $region20
        $region19: #{tpu_custom_call.1} parent=11 // pred_region
          _
        $region20: #{tpu_custom_call.1} parent=11 // pred_fallthru
          _
        // Predicated region
        $region21: #{tpu_custom_call.1} parent=11 // pred_check
          %p215 = pneg %p105
        $region22: #{tpu_custom_call.1} parent=11 // pred_check_branch
          %217 = sbr.rel (%p215) target = $region24
        $region23: #{tpu_custom_call.1} parent=11 // pred_region
          _
        $region24: #{tpu_custom_call.1} parent=11 // pred_fallthru
          _
        // Predicated region
        $region25: #{tpu_custom_call.1} parent=11 // pred_check
          %p218 = pneg %p126
        $region26: #{tpu_custom_call.1} parent=11 // pred_check_branch
          %220 = sbr.rel (%p218) target = $region28
        $region27: #{tpu_custom_call.1} parent=11 // pred_region
          _
        $region28: #{tpu_custom_call.1} parent=11 // pred_fallthru
          _
        // Predicated region
        $region29: #{tpu_custom_call.1} parent=11 // pred_check
          %p221 = pneg %p147
        $region30: #{tpu_custom_call.1} parent=11 // pred_check_branch
          %223 = sbr.rel (%p221) target = $region32
        $region31: #{tpu_custom_call.1} parent=11 // pred_region
          _
        $region32: #{tpu_custom_call.1} parent=11 // pred_fallthru
          _
        // Predicated region
        $region33: #{tpu_custom_call.1} parent=11 // pred_check
          %p224 = pneg %p168
        $region34: #{tpu_custom_call.1} parent=11 // pred_check_branch
          %226 = sbr.rel (%p224) target = $region36
        $region35: #{tpu_custom_call.1} parent=11 // pred_region
          _
        $region36: #{tpu_custom_call.1} parent=11 // pred_fallthru
          _
      $region12: #{tpu_custom_call.1} parent=5 // pred_fallthru
        _
      %p227 = scmp.lt.s32.totalorder %s16, 2
      // Predicated region
      $region37: #{tpu_custom_call.1} parent=5 // pred_check
        %p228 = pneg %p227
      $region38: #{tpu_custom_call.1} parent=5 // pred_check_branch
        %230 = sbr.rel (%p228) target = $region40
      $region39: #{tpu_custom_call.1} parent=5 // pred_region
        // Predicated region
        $region41: #{tpu_custom_call.1} parent=39 // pred_check
          %p231 = pneg %p36
        $region42: #{tpu_custom_call.1} parent=39 // pred_check_branch
          %233 = sbr.rel (%p231) target = $region44
        $region43: #{tpu_custom_call.1} parent=39 // pred_region
          %p234 = scmp.lt.s32.totalorder %s16, 1
          %s235 = scalar_select %p234, %s16, 1
          %s236 = smul.addr %s235, 4
          %s237 = scalar_lea.vmem %s0, %s236
        $region44: #{tpu_custom_call.1} parent=39 // pred_fallthru
          _
      $region40: #{tpu_custom_call.1} parent=5 // pred_fallthru
        _
      %p238 = scmp.le.s32.totalorder 1, %s16
      %p239 = scmp.lt.s32.totalorder %s16, 3
      %p240 = pnand %p238, %p239
      %p241 = pneg %p240
      // Predicated region
      $region45: #{tpu_custom_call.1} parent=5 // pred_check
        _
      $region46: #{tpu_custom_call.1} parent=5 // pred_check_branch
        %243 = sbr.rel (%p240) target = $region48
      $region47: #{tpu_custom_call.1} parent=5 // pred_region
        %s244 = ssub.s32 %s16, 1
        %p245 = scmp.lt.s32.totalorder %s21, 1
        %s246 = scalar_select %p245, %s21, 1
        %s247 = smul.addr %s246, 4
        %s248 = scalar_lea.vmem %s0, %s247
        %p249 = pneg %p42
        %p250 = pneg %p39
        %p251 = pneg %p63
        %p252 = pneg %p60
        %p253 = pneg %p84
        %p254 = pneg %p81
        %p255 = pneg %p105
        %p256 = pneg %p102
        %p257 = pneg %p126
        %p258 = pneg %p123
        %p259 = pneg %p147
        %p260 = pneg %p144
        %p261 = pneg %p168
        %p262 = pneg %p165
        %p263 = pneg %p194
        %p264 = pneg %p191
        %s265 = sand.u32 %s181, 1
        %s266 = scalar_lea.sflag [#allocation5], %s265
        %s267 = sand.u32 %s181, 1
        %s268 = smul.addr %s267, 8
        %s269 = scalar_lea.vmem [#allocation4], %s268
        %p270 = scmp.lt.s32.totalorder %s21, 1
        %s271 = scalar_select %p270, %s21, 1
        %s272 = smul.addr %s271, 4
        %s273 = scalar_lea.vmem %s0, %s272
        %v275 = vld [vmem:[%s273] sm:$0xf]
        %v276 = vpack.c.bf16 %v275, %v275
        %vm277 = vcmask 25600
        %278 = vst.msk [vmem:[#allocation2] sm:$0x3] %vm277, 0
        %v280 = vunpack.c.l.b16 %v276
        %v281 = vpack.c.b16 %v280, %v280
        %282 = vrot.lane.b32.xlu0 %v281, 4
        %v283 = vpop.permute.xlu0 %282
        %vm285 = vcmask 33824
        %286 = vst.msk [vmem:[#allocation2] sm:$0x3] %vm285, %v283
        %vm287 = vcmask 11266
        %288 = vst.msk [vmem:[#allocation2] sm:$0xc] %vm287, 0
        %vm289 = vcmask 35866
        %290 = vst.msk [vmem:[#allocation2] sm:$0xc] %vm289, 0
        %v291 = vrot.slane %v281, 6
        %292 = vrot.lane.b32.xlu0 %v291, 2
        %v293 = vpop.permute.xlu0 %292
        %vm295 = vcmask 19474
        %296 = vst.msk [vmem:[#allocation2] sm:$0xc] %vm295, %v293
        %vm297 = vcmask 33800
        %298 = vst.msk [vmem:[#allocation2 + $0x4] sm:$0x3] %vm297, 0
        %vm299 = vcmask 1024
        %300 = vst.msk [vmem:[#allocation2 + $0x4] sm:$0x3] %vm299, %v276
        %v301 = vld [vmem:[%s1] sm:$0xf]
        %v302 = vld [vmem:[#allocation2] sm:$0xf]
        %v303 = vld [vmem:[#allocation2 + $0x4] sm:$0x3]
        %v304 = vld [vmem:[%s2] sm:$0xff]
        %306 = vset.pattern.permute.xlu0 0
        %307 = vperm.xlu0 %306, %v304
        %v308 = vpop.permute.xlu0 %307
        %v312 = vunpack.c.l.b16 %v302
        %v313 = vunpack.c.l.b16 %v303
        %v314 = vpack.c.b16 %v313, %v312
        %vm315 = vcmask 97280
        %v317 = vsel %vm315, %v301, 0
        %vm319 = vcmask 1045504
        %v321 = vsel %vm319, %v314, 0
        %323 = vmatprep.subr.bf16.mxu0 0
        %324 = vmatpush1.bf16.msra.mxu0 0
        %325 = vmatprep.subr.bf16.mxu0 0
        %326 = vmatpush1.bf16.msra.mxu0 0
        %327 = vmatprep.subr.bf16.mxu0 0
        %328 = vmatpush1.bf16.msra.mxu0 0
        %329 = vmatprep.subr.bf16.mxu0 0
        %330 = vmatpush1.bf16.msra.mxu0 0
        %331 = vmatprep.subr.bf16.mxu0 0
        %332 = vmatpush1.bf16.msra.mxu0 0
        %333 = vmatprep.subr.bf16.mxu0 0
        %334 = vmatpush1.bf16.msra.mxu0 0
        %335 = vmatprep.subr.bf16.mxu0 0
        %336 = vmatpush1.bf16.msra.mxu0 0
        %337 = vmatprep.subr.bf16.mxu0 0
        %338 = vmatpush1.bf16.msra.mxu0 %v321
        %339 = vmatprep.subr.bf16.mxu0 0
        %340 = vmatpush2.bf16.msra.mxu0 0
        %341 = vmatprep.subr.bf16.mxu0 0
        %342 = vmatpush2.bf16.msra.mxu0 0
        %343 = vmatprep.subr.bf16.mxu0 0
        %344 = vmatpush2.bf16.msra.mxu0 0
        %345 = vmatprep.subr.bf16.mxu0 0
        %346 = vmatpush2.bf16.msra.mxu0 0
        %347 = vmatprep.subr.bf16.mxu0 0
        %348 = vmatpush2.bf16.msra.mxu0 0
        %349 = vmatprep.subr.bf16.mxu0 0
        %350 = vmatpush2.bf16.msra.mxu0 0
        %351 = vmatprep.subr.bf16.mxu0 0
        %352 = vmatpush2.bf16.msra.mxu0 0
        %353 = vmatprep.subr.bf16.mxu0 0
        %354 = vmatpush2.bf16.msra.mxu0 0
        %355 = vmatprep.mubr.bf16.mxu0 0
        %356 = vmatmul.mubr.bf16.gmra.mxu0 %v317
        %v357 = vpop.f32.mrf.mxu0
        %v358 = vadd.f32 %v308, %v357
        %v359 = vpop.f32.mrf.mxu0
        %v360 = vpop.f32.mrf.mxu0
        %v361 = vpop.f32.mrf.mxu0
        %362 = vdwg.mxu0
        %v363 = vmax.f32 %v358, 0.0
        %v364 = vpack.c.bf16 %v363, %v363
        %vm365 = vcmask 27648
        %366 = vst.msk [vmem:[#allocation3] sm:$0xf] %vm365, 0
        %v368 = vunpack.c.l.b16 %v364
        %v369 = vpack.c.b16 %v368, %v368
        %370 = vrot.lane.b32.xlu0 %v369, 4
        %v371 = vpop.permute.xlu0 %370
        %vm373 = vcmask 68640
        %374 = vst.msk [vmem:[#allocation3] sm:$0xf] %vm373, %v371
        %vm375 = vcmask 11264
        %376 = vst.msk [vmem:[#allocation3 + $0x4] sm:$0xf] %vm375, 0
        %vm377 = vcmask 68664
        %378 = vst.msk [vmem:[#allocation3 + $0x4] sm:$0xf] %vm377, 0
        %379 = vrot.lane.b32.xlu0 %v369, 2
        %v380 = vpop.permute.xlu0 %379
        %vm382 = vcmask 52240
        %383 = vst.msk [vmem:[#allocation3 + $0x4] sm:$0xf] %vm382, %v380
        %vm384 = vcmask 68648
        %385 = vst.msk [vmem:[#allocation3 + $0x8] sm:$0xf] %vm384, 0
        %vm386 = vcmask 35840
        %387 = vst.msk [vmem:[#allocation3 + $0x8] sm:$0xf] %vm386, %v364
        %v388 = vld [vmem:[%s3] sm:$0xf]
        %v389 = vld [vmem:[#allocation3] sm:$0xf]
        %v390 = vld [vmem:[#allocation3 + $0x4] sm:$0xf]
        %v391 = vld [vmem:[#allocation3 + $0x8] sm:$0xf]
        %v392 = vld [vmem:[%s4] sm:$0xff]
        %394 = vset.pattern.permute.xlu0 0
        %395 = vperm.xlu0 %394, %v392
        %v396 = vpop.permute.xlu0 %395
        %v401 = vunpack.c.l.b16 %v389
        %v402 = vunpack.c.l.b16 %v390
        %v403 = vunpack.c.l.b16 %v391
        %v404 = vpack.c.b16 %v402, %v401
        %v405 = vpack.c.b16 %v403, %v403
        %vm407 = vcmask 195584
        %v409 = vsel %vm407, %v388, 0
        %vm411 = vcmask 1043456
        %v413 = vsel %vm411, %v405, 0
        %415 = vmatprep.subr.bf16.mxu0 0
        %416 = vmatpush1.bf16.msra.mxu0 0
        %417 = vmatprep.subr.bf16.mxu0 0
        %418 = vmatpush1.bf16.msra.mxu0 0
        %419 = vmatprep.subr.bf16.mxu0 0
        %420 = vmatpush1.bf16.msra.mxu0 0
        %421 = vmatprep.subr.bf16.mxu0 0
        %422 = vmatpush1.bf16.msra.mxu0 0
        %423 = vmatprep.subr.bf16.mxu0 0
        %424 = vmatpush1.bf16.msra.mxu0 0
        %425 = vmatprep.subr.bf16.mxu0 0
        %426 = vmatpush1.bf16.msra.mxu0 0
        %427 = vmatprep.subr.bf16.mxu0 0
        %428 = vmatpush1.bf16.msra.mxu0 %v413
        %429 = vmatprep.subr.bf16.mxu0 0
        %430 = vmatpush1.bf16.msra.mxu0 %v404
        %431 = vmatprep.subr.bf16.mxu0 0
        %432 = vmatpush2.bf16.msra.mxu0 0
        %433 = vmatprep.subr.bf16.mxu0 0
        %434 = vmatpush2.bf16.msra.mxu0 0
        %435 = vmatprep.subr.bf16.mxu0 0
        %436 = vmatpush2.bf16.msra.mxu0 0
        %437 = vmatprep.subr.bf16.mxu0 0
        %438 = vmatpush2.bf16.msra.mxu0 0
        %439 = vmatprep.subr.bf16.mxu0 0
        %440 = vmatpush2.bf16.msra.mxu0 0
        %441 = vmatprep.subr.bf16.mxu0 0
        %442 = vmatpush2.bf16.msra.mxu0 0
        %443 = vmatprep.subr.bf16.mxu0 0
        %444 = vmatpush2.bf16.msra.mxu0 0
        %445 = vmatprep.subr.bf16.mxu0 0
        %446 = vmatpush2.bf16.msra.mxu0 0
        %447 = vmatprep.mubr.bf16.mxu0 0
        %448 = vmatmul.mubr.bf16.gmra.mxu0 %v409
        %v449 = vpop.f32.mrf.mxu0
        %v450 = vadd.f32 %v396, %v449
        %v451 = vpop.f32.mrf.mxu0
        %v452 = vpop.f32.mrf.mxu0
        %v453 = vpop.f32.mrf.mxu0
        %454 = vdwg.mxu0
        %v455 = vmax.f32 %v450, 0.0
        %v456 = vld [vmem:[%s5] sm:$0xf]
        %v457 = vld [vmem:[%s6] sm:$0xff]
        %vm458 = vcmask 31744
        %v460 = vsel %vm458, %v456, 0
        %vm462 = vcmask 1041408
        %v464 = vsel %vm462, %v276, 0
        %466 = vmatprep.subr.bf16.mxu0 0
        %467 = vmatpush1.bf16.msra.mxu0 0
        %468 = vmatprep.subr.bf16.mxu0 0
        %469 = vmatpush1.bf16.msra.mxu0 0
        %470 = vmatprep.subr.bf16.mxu0 0
        %471 = vmatpush1.bf16.msra.mxu0 0
        %472 = vmatprep.subr.bf16.mxu0 0
        %473 = vmatpush1.bf16.msra.mxu0 0
        %474 = vmatprep.subr.bf16.mxu0 0
        %475 = vmatpush1.bf16.msra.mxu0 0
        %476 = vmatprep.subr.bf16.mxu0 0
        %477 = vmatpush1.bf16.msra.mxu0 0
        %478 = vmatprep.subr.bf16.mxu0 0
        %479 = vmatpush1.bf16.msra.mxu0 0
        %480 = vmatprep.subr.bf16.mxu0 0
        %481 = vmatpush1.bf16.msra.mxu0 %v464
        %482 = vmatprep.subr.bf16.mxu0 0
        %483 = vmatpush2.bf16.msra.mxu0 0
        %484 = vmatprep.subr.bf16.mxu0 0
        %485 = vmatpush2.bf16.msra.mxu0 0
        %486 = vmatprep.subr.bf16.mxu0 0
        %487 = vmatpush2.bf16.msra.mxu0 0
        %488 = vmatprep.subr.bf16.mxu0 0
        %489 = vmatpush2.bf16.msra.mxu0 0
        %490 = vmatprep.subr.bf16.mxu0 0
        %491 = vmatpush2.bf16.msra.mxu0 0
        %492 = vmatprep.subr.bf16.mxu0 0
        %493 = vmatpush2.bf16.msra.mxu0 0
        %494 = vmatprep.subr.bf16.mxu0 0
        %495 = vmatpush2.bf16.msra.mxu0 0
        %496 = vmatprep.subr.bf16.mxu0 0
        %497 = vmatpush2.bf16.msra.mxu0 0
        %498 = vmatprep.mubr.bf16.mxu0 0
        %499 = vmatmul.mubr.bf16.gmra.mxu0 %v460
        %v500 = vpop.f32.mrf.mxu0
        %v501 = vadd.f32 %v457, %v500
        %v502 = vpop.f32.mrf.mxu0
        %v503 = vpop.f32.mrf.mxu0
        %v504 = vpop.f32.mrf.mxu0
        %505 = vdwg.mxu0
        %507 = vset.pattern.permute.xlu0 0
        %508 = vperm.xlu0 %507, %v501
        %v509 = vpop.permute.xlu0 %508
        %v511 = vadd.f32 %v455, %v509
        %vm512 = vcmask 72704
        %513 = vst.msk [vmem:[%s269] sm:$0xff] %vm512, %v511
        %s514 = sand.u32 %s181, 1
        %s515 = scalar_lea.sflag [#allocation5], %s514
        %s516 = sand.u32 %s181, 1
        %s517 = smul.addr %s516, 8
        %s518 = scalar_lea.vmem [#allocation4], %s517
        // Predicated region
        $region49: #{tpu_custom_call.1} parent=47 // pred_check
          %p519 = pneg %p191
        $region50: #{tpu_custom_call.1} parent=47 // pred_check_branch
          %521 = sbr.rel (%p519) target = $region52
        $region51: #{tpu_custom_call.1} parent=47 // pred_region
          %s523 = ssub.s32 128, 128
          %524 = vsyncadd %s515, %s523
          %s525 = smul.addr %s21, 128
          %s526 = scalar_lea.hbm %s7, %s525
          %s528 = sshll.u32 %s518, 4
          %s529 = int_to_ptr.vmem [resolvable:$true] %s528
          %531 = dma.vmem_to_hbm [thread:$0]  %s529, 128, %s526, %s515
        $region52: #{tpu_custom_call.1} parent=47 // pred_fallthru
          _
      $region48: #{tpu_custom_call.1} parent=5 // pred_fallthru
        _
      %p532 = scmp.le.s32.totalorder 2, %s16
      // Predicated region
      $region53: #{tpu_custom_call.1} parent=5 // pred_check
        %p533 = pneg %p532
      $region54: #{tpu_custom_call.1} parent=5 // pred_check_branch
        %535 = sbr.rel (%p533) target = $region56
      $region55: #{tpu_custom_call.1} parent=5 // pred_region
        %s536 = ssub.s32 %s16, 2
        // Predicated region
        $region57: #{tpu_custom_call.1} parent=55 // pred_check
          %p537 = pneg %p197
        $region58: #{tpu_custom_call.1} parent=55 // pred_check_branch
          %539 = sbr.rel (%p537) target = $region60
        $region59: #{tpu_custom_call.1} parent=55 // pred_region
          %s540 = sand.u32 %s182, 1
          %s541 = scalar_lea.sflag [#allocation5], %s540
          %s542 = sand.u32 %s182, 1
          %s543 = smul.addr %s542, 8
          %s544 = scalar_lea.vmem [#allocation4], %s543
          %545 = dma.done %s541, 128
        $region60: #{tpu_custom_call.1} parent=55 // pred_fallthru
          _
      $region56: #{tpu_custom_call.1} parent=5 // pred_fallthru
        _
    $region6: #{tpu_custom_call.1} parent=1 // loop_footer
      %s20 = sadd.s32 1, %s16
    $region7: #{tpu_custom_call.1} parent=1 // loop_footer_branch
      %15 = sbr.rel target = $region3
    $region8: #{tpu_custom_call.1} parent=1 // loop_exit
      _
    %546 = vsyncpa [#allocation5], 1
    %s547 = scalar_lea.sflag [#allocation5], 1
    %548 = vsyncpa %s547, 1

</llo_original>
